<compile_context>
chip_gen: v7x
topology: tpu7x:2x2x1
jax: 0.10.0
libtpu: 0.0.40
codegen_flags: <defaults>
</compile_context>

<pallas_src>
import math

import jax
import jax.numpy as jnp
from jax.experimental import pallas as pl
from jax.experimental.pallas import tpu as pltpu


def _make_critic_kernel(precision):
    """Fused 3-layer MLP (tanh -> tanh -> linear), feature-major (batch on lanes)."""

    def kernel(xT_ref, w1t_ref, b1_ref, w2t_ref, b2_ref, w3t_ref, b3_ref, out_ref):
        # xT_ref: (S+A, TB)   weights: W^T (out_features, in_features)   biases: (H, 1)
        # Activations stay (features, TB) so every vreg is lane-full and the MXU output
        # free dimension is the batch.
        h1 = jnp.tanh(
            jnp.dot(w1t_ref[...], xT_ref[...],
                    preferred_element_type=jnp.float32, precision=precision)
            + b1_ref[...])                                         # (H1, TB)
        h2 = jnp.tanh(
            jnp.dot(w2t_ref[...], h1,
                    preferred_element_type=jnp.float32, precision=precision)
            + b2_ref[...])                                         # (H2, TB)
        # Head: (out_dim, H2) @ (H2, TB) -> (out_dim, TB).  In this layout the head is a
        # full-lane-width MXU row (no degenerate N=1 matmul to avoid), and the store is
        # lane-dense.
        out_ref[...] = (
            jnp.dot(w3t_ref[...], h2,
                    preferred_element_type=jnp.float32, precision=precision)
            + b3_ref[...])

    return kernel


def _pad8(n):
    return ((n + 7) // 8) * 8


def critic_mlp_forward(state, action, params, *, max_batch_tile=4096, precision=None):
    """CriticMLP.forward: (state, action) -> fused MLP -> squeeze.

    `precision=jax.lax.Precision.HIGHEST` gives true-f32 matmul accuracy (default TPU
    precision truncates MXU operands to bf16).
    """
    state = state.astype(jnp.float32)      # matches torch .float()
    action = action.astype(jnp.float32)

    (w1, b1), (w2, b2), (w3, b3) = params
    B, S = state.shape
    A = action.shape[1]
    H1, H2 = w1.shape[1], w2.shape[1]
    out_dim = w3.shape[1]

    # --- feature-major operands (batch -> 128-lane axis) ------------------------------
    # Concat + transpose in the wrapper is layout plumbing on a (B, S+A) array and fuses
    # layer 1 into a single K = S+A contraction (no split-dot double MXU pushes).
    xT = jnp.concatenate((state, action), axis=1).T          # (S+A, B)
    w1t, w2t, w3t = w1.T, w2.T, w3.T                         # (H1,S+A), (H2,H1), (out,H2)
    b1c, b2c, b3c = b1.T, b2.T, b3.T                         # (H1,1), (H2,1), (out,1)

    # --- batch tile selection ----------------------------------------------------------
    if max_batch_tile % 128 != 0:
        raise ValueError("max_batch_tile must be a multiple of 128 (lane axis)")
    if B > max_batch_tile:
        TB = max_batch_tile                 # multiple of 128 -> lane-legal tile
    elif B >= 512 and B % 256 == 0:
        TB = B // 2                         # >=2 grid steps so both v7x TCs get work
    else:
        TB = B                              # single full-batch block (full-dim block is legal)
    grid = (pl.cdiv(B, TB),)

    # --- VMEM budget (generation-aware) -------------------------------------------------
    # Double-buffered pipelined tiles (xT, out) + single-buffered h1/h2 temporaries.
    est_bytes = (2 * (_pad8(S + A) + _pad8(out_dim)) + _pad8(H1) + _pad8(H2)) * TB * 4 \
                + (1 << 20)                 # weights/biases + slack
    vmem_limit = None
    if est_bytes > 12 * (1 << 20):          # nearing v5e's 16 MiB default scoped VMEM
        vmem_limit = min(2 * est_bytes, 48 * (1 << 20))   # headroom, < v7x 64 MiB physical

    def lane_tile(rows):
        # Batch-tiled along the lane axis; feature rows are the full (small) extent.
        return pl.BlockSpec((rows, TB), lambda i: (0, i))

    def whole(arr):
        # Constant index_map: weights/biases stay VMEM-resident across grid steps.
        return pl.BlockSpec(arr.shape, lambda i: (0, 0))

    out = pl.pallas_call(
        _make_critic_kernel(precision),
        out_shape=jax.ShapeDtypeStruct((out_dim, B), jnp.float32),
        grid=grid,
        in_specs=[
            lane_tile(S + A),        # xT tile        (S+A, TB)
            whole(w1t),              # W1^T           (H1, S+A)
            whole(b1c),              # b1             (H1, 1)
            whole(w2t),              # W2^T           (H2, H1)
            whole(b2c),              # b2             (H2, 1)
            whole(w3t),              # W3^T           (out_dim, H2)
            whole(b3c),              # b3             (out_dim, 1)
        ],
        out_specs=lane_tile(out_dim),        # (out_dim, TB) — lane-dense store
        compiler_params=pltpu.CompilerParams(
            dimension_semantics=("parallel",),   # shards batch tiles across TCs on v7x
            vmem_limit_bytes=vmem_limit),
    )(xT, w1t, b1c, w2t, b2c, w3t, b3c)

    # Back to (B, out_dim), then torch.squeeze semantics (drops out_dim==1; also B==1).
    return jnp.squeeze(out.T)


def init_critic_mlp_params(key, input_dim, size_list, output_dim):
    """Deterministic init matching MLP.weights_init:
    xavier_uniform (tanh gain for hidden layers, gain=1 for the last), zero bias.
    Weights are stored as (in, out) = PyTorch weight.T."""
    sizes = [input_dim] + list(size_list) + [output_dim]
    n_layers = len(sizes) - 1
    params = []
    keys = jax.random.split(key, n_layers)
    for i in range(n_layers):
        fan_in, fan_out = sizes[i], sizes[i + 1]
        is_last = i == n_layers - 1
        gain = 1.0 if is_last else 5.0 / 3.0   # nn.init.calculate_gain('tanh')
        limit = gain * math.sqrt(6.0 / (fan_in + fan_out))
        w = jax.random.uniform(
            keys[i], (fan_in, fan_out), dtype=jnp.float32, minval=-limit, maxval=limit
        )
        b = jnp.zeros((1, fan_out), dtype=jnp.float32)
        params.append((w, b))
    return params


def _reference_forward(state, action, params):
    """Pure-JAX f32 reference for correctness checking."""
    x = jnp.concatenate(
        (state.astype(jnp.float32), action.astype(jnp.float32)), axis=1
    )
    (w1, b1), (w2, b2), (w3, b3) = params
    h1 = jnp.tanh(x @ w1 + b1)
    h2 = jnp.tanh(h1 @ w2 + b2)
    return jnp.squeeze(h2 @ w3 + b3)


if __name__ == "__main__":
    key = jax.random.PRNGKey(0)
    k_state, k_action, k_params, k_state2, k_action2 = jax.random.split(key, 5)

    state_dim, action_dim, hidden, out_dim = 12, 4, [32, 32], 1
    params = init_critic_mlp_params(k_params, state_dim + action_dim, hidden, out_dim)

    # --- small-batch check (single grid step, full-batch block) ---
    batch = 8
    state = jax.random.normal(k_state, (batch, state_dim), dtype=jnp.float32)
    action = jax.random.normal(k_action, (batch, action_dim), dtype=jnp.float32)

    out = jax.block_until_ready(critic_mlp_forward(state, action, params))
    ref = _reference_forward(state, action, params)
    assert out.shape == (batch,), f"unexpected output shape {out.shape}"
    # Default MXU precision truncates operands to bf16; with K<=32 and O(1) magnitudes
    # the error stays well inside 1e-4 (use precision=HIGHEST for tighter tolerances).
    assert jnp.allclose(out, ref, atol=1e-4, rtol=1e-4), "mismatch vs reference (small B)"

    # --- large-batch check: exercises the lane-tiled batch grid (B=1024 -> 2 tiles of 512) ---
    big = 1024
    state_b = jax.random.normal(k_state2, (big, state_dim), dtype=jnp.float32)
    action_b = jax.random.normal(k_action2, (big, action_dim), dtype=jnp.float32)

    out_b = jax.block_until_ready(critic_mlp_forward(state_b, action_b, params))
    ref_b = _reference_forward(state_b, action_b, params)
    assert out_b.shape == (big,), f"unexpected output shape {out_b.shape}"
    assert jnp.allclose(out_b, ref_b, atol=1e-4, rtol=1e-4), "mismatch vs reference (large B)"

    print("KERNEL_OK")
</pallas_src>

<mosaic_0001>
module attributes {stable_mosaic.version = 11 : i64} {
  func.func @kernel(%arg0: i32, %arg1: memref<16x8xf32, #tpu.memory_space<vmem>>, %arg2: memref<32x16xf32, #tpu.memory_space<vmem>>, %arg3: memref<32x1xf32, #tpu.memory_space<vmem>>, %arg4: memref<32x32xf32, #tpu.memory_space<vmem>>, %arg5: memref<32x1xf32, #tpu.memory_space<vmem>>, %arg6: memref<1x32xf32, #tpu.memory_space<vmem>>, %arg7: memref<1x1xf32, #tpu.memory_space<vmem>>, %arg8: memref<1x8xf32, #tpu.memory_space<vmem>>) attributes {dimension_semantics = [#tpu.dimension_semantics<parallel>], iteration_bounds = array<i64: 1>, scalar_prefetch = 0 : i64, scratch_operands = 0 : i64, tpu.core_type = #tpu.core_type<tc>, window_params = [{transform_indices = @transform_0, window_bounds = array<i64: 16, 8>}, {pipeline_mode = #tpu.pipeline_mode<synchronous>, transform_indices = @transform_1, window_bounds = array<i64: 32, 16>}, {pipeline_mode = #tpu.pipeline_mode<synchronous>, transform_indices = @transform_2, window_bounds = array<i64: 32, 1>}, {pipeline_mode = #tpu.pipeline_mode<synchronous>, transform_indices = @transform_3, window_bounds = array<i64: 32, 32>}, {pipeline_mode = #tpu.pipeline_mode<synchronous>, transform_indices = @transform_4, window_bounds = array<i64: 32, 1>}, {pipeline_mode = #tpu.pipeline_mode<synchronous>, transform_indices = @transform_5, window_bounds = array<i64: 1, 32>}, {pipeline_mode = #tpu.pipeline_mode<synchronous>, transform_indices = @transform_6, window_bounds = array<i64: 1, 1>}, {transform_indices = @transform_7, window_bounds = array<i64: 1, 8>}]} {
    %c0 = arith.constant 0 : index
    %c0_0 = arith.constant 0 : index
    %0 = vector.load %arg2[%c0, %c0_0] : memref<32x16xf32, #tpu.memory_space<vmem>>, vector<32x16xf32>
    %c0_1 = arith.constant 0 : index
    %c0_2 = arith.constant 0 : index
    %1 = vector.load %arg1[%c0_1, %c0_2] : memref<16x8xf32, #tpu.memory_space<vmem>>, vector<16x8xf32>
    %cst = arith.constant dense<0.000000e+00> : vector<32x8xf32>
    %2 = tpu.matmul %0, %1, %cst {dimension_numbers = #tpu.dot_dimension_numbers<[1], [0], [0], [1], [0, 0, 1, 1], [], []>} : vector<32x16xf32>, vector<16x8xf32>, vector<32x8xf32> -> vector<32x8xf32>
    %c0_3 = arith.constant 0 : index
    %c0_4 = arith.constant 0 : index
    %3 = vector.load %arg3[%c0_3, %c0_4] : memref<32x1xf32, #tpu.memory_space<vmem>>, vector<32x1xf32>
    %4 = vector.broadcast %3 : vector<32x1xf32> to vector<32x8xf32>
    %5 = arith.addf %2, %4 : vector<32x8xf32>
    %6 = math.tanh %5 : vector<32x8xf32>
    %c0_5 = arith.constant 0 : index
    %c0_6 = arith.constant 0 : index
    %7 = vector.load %arg4[%c0_5, %c0_6] : memref<32x32xf32, #tpu.memory_space<vmem>>, vector<32x32xf32>
    %cst_7 = arith.constant dense<0.000000e+00> : vector<32x8xf32>
    %8 = tpu.matmul %7, %6, %cst_7 {dimension_numbers = #tpu.dot_dimension_numbers<[1], [0], [0], [1], [0, 0, 1, 1], [], []>} : vector<32x32xf32>, vector<32x8xf32>, vector<32x8xf32> -> vector<32x8xf32>
    %c0_8 = arith.constant 0 : index
    %c0_9 = arith.constant 0 : index
    %9 = vector.load %arg5[%c0_8, %c0_9] : memref<32x1xf32, #tpu.memory_space<vmem>>, vector<32x1xf32>
    %10 = vector.broadcast %9 : vector<32x1xf32> to vector<32x8xf32>
    %11 = arith.addf %8, %10 : vector<32x8xf32>
    %12 = math.tanh %11 : vector<32x8xf32>
    %c0_10 = arith.constant 0 : index
    %c0_11 = arith.constant 0 : index
    %13 = vector.load %arg6[%c0_10, %c0_11] : memref<1x32xf32, #tpu.memory_space<vmem>>, vector<1x32xf32>
    %cst_12 = arith.constant dense<0.000000e+00> : vector<1x8xf32>
    %14 = tpu.matmul %13, %12, %cst_12 {dimension_numbers = #tpu.dot_dimension_numbers<[1], [0], [0], [1], [0, 0, 1, 1], [], []>} : vector<1x32xf32>, vector<32x8xf32>, vector<1x8xf32> -> vector<1x8xf32>
    %c0_13 = arith.constant 0 : index
    %c0_14 = arith.constant 0 : index
    %15 = vector.load %arg7[%c0_13, %c0_14] : memref<1x1xf32, #tpu.memory_space<vmem>>, vector<1x1xf32>
    %16 = vector.broadcast %15 : vector<1x1xf32> to vector<1x8xf32>
    %17 = arith.addf %14, %16 : vector<1x8xf32>
    %c0_15 = arith.constant 0 : index
    %c0_16 = arith.constant 0 : index
    %18 = vector.load %arg8[%c0_15, %c0_16] : memref<1x8xf32, #tpu.memory_space<vmem>>, vector<1x8xf32>
    tpu.vector_store %arg8[%c0_15, %c0_16], %17 {strides = array<i32>} : memref<1x8xf32, #tpu.memory_space<vmem>>, vector<1x8xf32>,
    return
  }
  func.func @transform_0(%arg0: i32) -> (i32, i32) {
    %c0_i32 = arith.constant 0 : i32
    %c0_i32_0 = arith.constant 0 : i32
    return %c0_i32, %arg0 : i32, i32
  }
  func.func @transform_1(%arg0: i32) -> (i32, i32) {
    %c0_i32 = arith.constant 0 : i32
    %c0_i32_0 = arith.constant 0 : i32
    %c0_i32_1 = arith.constant 0 : i32
    return %c0_i32, %c0_i32_0 : i32, i32
  }
  func.func @transform_2(%arg0: i32) -> (i32, i32) {
    %c0_i32 = arith.constant 0 : i32
    %c0_i32_0 = arith.constant 0 : i32
    %c0_i32_1 = arith.constant 0 : i32
    return %c0_i32, %c0_i32_0 : i32, i32
  }
  func.func @transform_3(%arg0: i32) -> (i32, i32) {
    %c0_i32 = arith.constant 0 : i32
    %c0_i32_0 = arith.constant 0 : i32
    %c0_i32_1 = arith.constant 0 : i32
    return %c0_i32, %c0_i32_0 : i32, i32
  }
  func.func @transform_4(%arg0: i32) -> (i32, i32) {
    %c0_i32 = arith.constant 0 : i32
    %c0_i32_0 = arith.constant 0 : i32
    %c0_i32_1 = arith.constant 0 : i32
    return %c0_i32, %c0_i32_0 : i32, i32
  }
  func.func @transform_5(%arg0: i32) -> (i32, i32) {
    %c0_i32 = arith.constant 0 : i32
    %c0_i32_0 = arith.constant 0 : i32
    %c0_i32_1 = arith.constant 0 : i32
    return %c0_i32, %c0_i32_0 : i32, i32
  }
  func.func @transform_6(%arg0: i32) -> (i32, i32) {
    %c0_i32 = arith.constant 0 : i32
    %c0_i32_0 = arith.constant 0 : i32
    %c0_i32_1 = arith.constant 0 : i32
    return %c0_i32, %c0_i32_0 : i32, i32
  }
  func.func @transform_7(%arg0: i32) -> (i32, i32) {
    %c0_i32 = arith.constant 0 : i32
    %c0_i32_0 = arith.constant 0 : i32
    return %c0_i32, %arg0 : i32, i32
  }
}

</mosaic_0001>

<llo_original>
// kernel: tpu_custom_call.1
$region0: #{tpu_custom_call.1}
  #allocation0 [shape = 'u32[]', space=smem, size = 0x4, offset = 0x4, fixed_abs, tag = 'smem constant byte address 0x4 - core index']
  #allocation1 [shape = 'u32[144,128]{1,0:T(1,128)}', space=vmem, size = 0x12000, scoped, tag = 'internal scratch']
  #allocation2 [shape = 'f32[1,1]{1,0:T(1,128)S(1)}', space=vmem, size = 0x200, scoped, tag = 'scoped memory for tpu_custom_call.1']
  %s0 = inlined_call_operand.vmem [shape: f32[16,8], index: 0, kind: input, shape index: {}]
  %s1 = inlined_call_operand.vmem [shape: f32[32,16], index: 1, kind: input, shape index: {}]
  %s2 = inlined_call_operand.vmem [shape: f32[32,1], index: 2, kind: input, shape index: {}]
  %s3 = inlined_call_operand.vmem [shape: f32[32,32], index: 3, kind: input, shape index: {}]
  %s4 = inlined_call_operand.vmem [shape: f32[32,1], index: 4, kind: input, shape index: {}]
  %s5 = inlined_call_operand.vmem [shape: f32[1,32], index: 5, kind: input, shape index: {}]
  %s6 = inlined_call_operand.<no memory space> [shape: f32[1,1], index: 6, kind: input, shape index: {}]
  %s7 = inlined_call_operand.hbm [shape: f32[1,8], index: 7, kind: output, shape index: {}]
  %s8 = sld [smem:[#allocation0]]
  $region38: #{tpu_custom_call.1} parent=0
    _
  %s10 = ssub.s32 1, %s8
  %s11 = scalar_select 0, %s10, %s8
  %v12 = vstv %s6
  %13 = vst [vmem:[#allocation2] sm:$0x1] %v12
  $region1: #{tpu_custom_call.1} parent=0
    #allocation3 [shape = 'u8[512]{0}', space=vmem, size = 0x400, scoped, tag = 'output window, operand 0, single buffered']
    #allocation4 [shape = 's32[1]{0}', space=sflag, size = 0x4, scoped, tag = 'scoped memory for tpu_custom_call.1']
    %14 = vsyncpa [#allocation4], 0
    // Predicated region
    $region2: #{tpu_custom_call.1} parent=1 // pred_check
      _
    $region3: #{tpu_custom_call.1} parent=1 // pred_check_branch
      %16 = sbr.rel (0) target = $region5
    $region4: #{tpu_custom_call.1} parent=1 // pred_region
      _
    $region5: #{tpu_custom_call.1} parent=1 // pred_fallthru
      _
    // Predicated region
    $region6: #{tpu_custom_call.1} parent=1 // pred_check
      _
    $region7: #{tpu_custom_call.1} parent=1 // pred_check_branch
      %18 = sbr.rel (0) target = $region9
    $region8: #{tpu_custom_call.1} parent=1 // pred_region
      _
    $region9: #{tpu_custom_call.1} parent=1 // pred_fallthru
      _
    // Predicated region
    $region10: #{tpu_custom_call.1} parent=1 // pred_check
      _
    $region11: #{tpu_custom_call.1} parent=1 // pred_check_branch
      %20 = sbr.rel (0) target = $region13
    $region12: #{tpu_custom_call.1} parent=1 // pred_region
      _
    $region13: #{tpu_custom_call.1} parent=1 // pred_fallthru
      _
    // Predicated region
    $region14: #{tpu_custom_call.1} parent=1 // pred_check
      _
    $region15: #{tpu_custom_call.1} parent=1 // pred_check_branch
      %22 = sbr.rel (0) target = $region17
    $region16: #{tpu_custom_call.1} parent=1 // pred_region
      _
    $region17: #{tpu_custom_call.1} parent=1 // pred_fallthru
      _
    // Predicated region
    $region18: #{tpu_custom_call.1} parent=1 // pred_check
      _
    $region19: #{tpu_custom_call.1} parent=1 // pred_check_branch
      %24 = sbr.rel (0) target = $region21
    $region20: #{tpu_custom_call.1} parent=1 // pred_region
      _
    $region21: #{tpu_custom_call.1} parent=1 // pred_fallthru
      _
    // Predicated region
    $region22: #{tpu_custom_call.1} parent=1 // pred_check
      _
    $region23: #{tpu_custom_call.1} parent=1 // pred_check_branch
      %26 = sbr.rel (0) target = $region25
    $region24: #{tpu_custom_call.1} parent=1 // pred_region
      _
    $region25: #{tpu_custom_call.1} parent=1 // pred_fallthru
      _
    // Predicated region
    $region26: #{tpu_custom_call.1} parent=1 // pred_check
      _
    $region27: #{tpu_custom_call.1} parent=1 // pred_check_branch
      %28 = sbr.rel (0) target = $region29
    $region28: #{tpu_custom_call.1} parent=1 // pred_region
      _
    $region29: #{tpu_custom_call.1} parent=1 // pred_fallthru
      _
    %v29 = vld [vmem:[%s1] sm:$0xff]
    %v30 = vld [vmem:[%s1 + $0x8] sm:$0xff]
    %v31 = vld [vmem:[%s1 + $0x10] sm:$0xff]
    %v32 = vld [vmem:[%s1 + $0x18] sm:$0xff]
    %v33 = vld [vmem:[%s0] sm:$0xff]
    %v34 = vld [vmem:[%s0 + $0x8] sm:$0xff]
    %v35 = vld [vmem:[%s2] sm:$0xff]
    %v36 = vld [vmem:[%s2 + $0x8] sm:$0xff]
    %v37 = vld [vmem:[%s2 + $0x10] sm:$0xff]
    %v38 = vld [vmem:[%s2 + $0x18] sm:$0xff]
    %40 = vset.pattern.permute.xlu0 0
    %41 = vperm.xlu0 %40, %v35
    %v42 = vpop.permute.xlu0 %41
    %45 = vset.pattern.permute.xlu0 0
    %46 = vperm.xlu0 %45, %v36
    %v47 = vpop.permute.xlu0 %46
    %50 = vset.pattern.permute.xlu0 0
    %51 = vperm.xlu0 %50, %v37
    %v52 = vpop.permute.xlu0 %51
    %55 = vset.pattern.permute.xlu0 0
    %56 = vperm.xlu0 %55, %v38
    %v57 = vpop.permute.xlu0 %56
    %vm59 = vcmask 130048
    %v61 = vsel %vm59, %v29, 0
    %v64 = vsel %vm59, %v30, 0
    %v67 = vsel %vm59, %v31, 0
    %v70 = vsel %vm59, %v32, 0
    %72 = vmatprep.subr.mxu0 0.0
    %73 = vmatpush1.msra.mxu0 %v33
    %74 = vmatprep.subr.mxu0 0.0
    %75 = vmatpush1.msra.mxu0 %v34
    %76 = vmatprep.subr.mxu0 0.0
    %77 = vmatpush1.msra.mxu0 0.0
    %78 = vmatprep.subr.mxu0 0.0
    %79 = vmatpush1.msra.mxu0 0.0
    %80 = vmatprep.subr.mxu0 0.0
    %81 = vmatpush1.msra.mxu0 0.0
    %82 = vmatprep.subr.mxu0 0.0
    %83 = vmatpush1.msra.mxu0 0.0
    %84 = vmatprep.subr.mxu0 0.0
    %85 = vmatpush1.msra.mxu0 0.0
    %86 = vmatprep.subr.mxu0 0.0
    %87 = vmatpush1.msra.mxu0 0.0
    %88 = vmatprep.subr.mxu0 0.0
    %89 = vmatpush1.msra.mxu0 0.0
    %90 = vmatprep.subr.mxu0 0.0
    %91 = vmatpush1.msra.mxu0 0.0
    %92 = vmatprep.subr.mxu0 0.0
    %93 = vmatpush1.msra.mxu0 0.0
    %94 = vmatprep.subr.mxu0 0.0
    %95 = vmatpush1.msra.mxu0 0.0
    %96 = vmatprep.subr.mxu0 0.0
    %97 = vmatpush1.msra.mxu0 0.0
    %98 = vmatprep.subr.mxu0 0.0
    %99 = vmatpush1.msra.mxu0 0.0
    %100 = vmatprep.subr.mxu0 0.0
    %101 = vmatpush1.msra.mxu0 0.0
    %102 = vmatprep.subr.mxu0 0.0
    %103 = vmatpush1.msra.mxu0 0.0
    %104 = vmatprep.subr.mxu0 0.0
    %105 = vmatpush1.msra.mxu0 0.0
    %106 = vmatprep.subr.mxu0 0.0
    %107 = vmatpush1.msra.mxu0 0.0
    %108 = vmatprep.subr.mxu0 0.0
    %109 = vmatpush1.msra.mxu0 0.0
    %110 = vmatprep.subr.mxu0 0.0
    %111 = vmatpush1.msra.mxu0 0.0
    %112 = vmatprep.subr.mxu0 0.0
    %113 = vmatpush1.msra.mxu0 0.0
    %114 = vmatprep.subr.mxu0 0.0
    %115 = vmatpush1.msra.mxu0 0.0
    %116 = vmatprep.subr.mxu0 0.0
    %117 = vmatpush1.msra.mxu0 0.0
    %118 = vmatprep.subr.mxu0 0.0
    %119 = vmatpush1.msra.mxu0 0.0
    %120 = vmatprep.subr.mxu0 0.0
    %121 = vmatpush1.msra.mxu0 0.0
    %122 = vmatprep.subr.mxu0 0.0
    %123 = vmatpush1.msra.mxu0 0.0
    %124 = vmatprep.subr.mxu0 0.0
    %125 = vmatpush1.msra.mxu0 0.0
    %126 = vmatprep.subr.mxu0 0.0
    %127 = vmatpush1.msra.mxu0 0.0
    %128 = vmatprep.subr.mxu0 0.0
    %129 = vmatpush1.msra.mxu0 0.0
    %130 = vmatprep.subr.mxu0 0.0
    %131 = vmatpush1.msra.mxu0 0.0
    %132 = vmatprep.subr.mxu0 0.0
    %133 = vmatpush1.msra.mxu0 0.0
    %134 = vmatprep.subr.mxu0 0.0
    %135 = vmatpush1.msra.mxu0 0.0
    %136 = vmatprep.mubr.f32.mxu0 0.0
    %137 = vmatmul.mubr.f32.gmra.mrb[0].mxu0 %v61
    %v138 = vpop.f32.mrb[0].mxu0
    %v139 = vadd.f32 %v42, %v138
    %v140 = vpop.f32.mrb[0].mxu0
    %141 = vmatprep.mubr.f32.mxu0 0.0
    %142 = vmatmul.mubr.f32.gmra.mrb[0].mxu0 %v64
    %v143 = vpop.f32.mrb[0].mxu0
    %v144 = vadd.f32 %v47, %v143
    %v145 = vpop.f32.mrb[0].mxu0
    %146 = vmatprep.mubr.f32.mxu0 0.0
    %147 = vmatmul.mubr.f32.gmra.mrb[0].mxu0 %v67
    %v148 = vpop.f32.mrb[0].mxu0
    %v149 = vadd.f32 %v52, %v148
    %v150 = vpop.f32.mrb[0].mxu0
    %151 = vmatprep.mubr.f32.mxu0 0.0
    %152 = vmatmul.mubr.f32.gmra.mrb[0].mxu0 %v70
    %v153 = vpop.f32.mrb[0].mxu0
    %v154 = vadd.f32 %v57, %v153
    %v155 = vpop.f32.mrb[0].mxu0
    %156 = vdwg.mxu0
    %v157 = vtanh.pop %v139
    %v158 = vtanh.pop %v144
    %v159 = vtanh.pop %v149
    %v160 = vtanh.pop %v154
    %v161 = vld [vmem:[%s3] sm:$0xff]
    %v162 = vld [vmem:[%s3 + $0x8] sm:$0xff]
    %v163 = vld [vmem:[%s3 + $0x10] sm:$0xff]
    %v164 = vld [vmem:[%s3 + $0x18] sm:$0xff]
    %v165 = vld [vmem:[%s4] sm:$0xff]
    %v166 = vld [vmem:[%s4 + $0x8] sm:$0xff]
    %v167 = vld [vmem:[%s4 + $0x10] sm:$0xff]
    %v168 = vld [vmem:[%s4 + $0x18] sm:$0xff]
    %170 = vset.pattern.permute.xlu0 0
    %171 = vperm.xlu0 %170, %v165
    %v172 = vpop.permute.xlu0 %171
    %175 = vset.pattern.permute.xlu0 0
    %176 = vperm.xlu0 %175, %v166
    %v177 = vpop.permute.xlu0 %176
    %180 = vset.pattern.permute.xlu0 0
    %181 = vperm.xlu0 %180, %v167
    %v182 = vpop.permute.xlu0 %181
    %185 = vset.pattern.permute.xlu0 0
    %186 = vperm.xlu0 %185, %v168
    %v187 = vpop.permute.xlu0 %186
    %vm189 = vcmask 261120
    %v191 = vsel %vm189, %v161, 0
    %v194 = vsel %vm189, %v162, 0
    %v197 = vsel %vm189, %v163, 0
    %v200 = vsel %vm189, %v164, 0
    %202 = vmatprep.subr.mxu0 0.0
    %203 = vmatpush1.msra.mxu0 %v157
    %204 = vmatprep.subr.mxu0 0.0
    %205 = vmatpush1.msra.mxu0 %v158
    %206 = vmatprep.subr.mxu0 0.0
    %207 = vmatpush1.msra.mxu0 %v159
    %208 = vmatprep.subr.mxu0 0.0
    %209 = vmatpush1.msra.mxu0 %v160
    %210 = vmatprep.subr.mxu0 0.0
    %211 = vmatpush1.msra.mxu0 0.0
    %212 = vmatprep.subr.mxu0 0.0
    %213 = vmatpush1.msra.mxu0 0.0
    %214 = vmatprep.subr.mxu0 0.0
    %215 = vmatpush1.msra.mxu0 0.0
    %216 = vmatprep.subr.mxu0 0.0
    %217 = vmatpush1.msra.mxu0 0.0
    %218 = vmatprep.subr.mxu0 0.0
    %219 = vmatpush1.msra.mxu0 0.0
    %220 = vmatprep.subr.mxu0 0.0
    %221 = vmatpush1.msra.mxu0 0.0
    %222 = vmatprep.subr.mxu0 0.0
    %223 = vmatpush1.msra.mxu0 0.0
    %224 = vmatprep.subr.mxu0 0.0
    %225 = vmatpush1.msra.mxu0 0.0
    %226 = vmatprep.subr.mxu0 0.0
    %227 = vmatpush1.msra.mxu0 0.0
    %228 = vmatprep.subr.mxu0 0.0
    %229 = vmatpush1.msra.mxu0 0.0
    %230 = vmatprep.subr.mxu0 0.0
    %231 = vmatpush1.msra.mxu0 0.0
    %232 = vmatprep.subr.mxu0 0.0
    %233 = vmatpush1.msra.mxu0 0.0
    %234 = vmatprep.subr.mxu0 0.0
    %235 = vmatpush1.msra.mxu0 0.0
    %236 = vmatprep.subr.mxu0 0.0
    %237 = vmatpush1.msra.mxu0 0.0
    %238 = vmatprep.subr.mxu0 0.0
    %239 = vmatpush1.msra.mxu0 0.0
    %240 = vmatprep.subr.mxu0 0.0
    %241 = vmatpush1.msra.mxu0 0.0
    %242 = vmatprep.subr.mxu0 0.0
    %243 = vmatpush1.msra.mxu0 0.0
    %244 = vmatprep.subr.mxu0 0.0
    %245 = vmatpush1.msra.mxu0 0.0
    %246 = vmatprep.subr.mxu0 0.0
    %247 = vmatpush1.msra.mxu0 0.0
    %248 = vmatprep.subr.mxu0 0.0
    %249 = vmatpush1.msra.mxu0 0.0
    %250 = vmatprep.subr.mxu0 0.0
    %251 = vmatpush1.msra.mxu0 0.0
    %252 = vmatprep.subr.mxu0 0.0
    %253 = vmatpush1.msra.mxu0 0.0
    %254 = vmatprep.subr.mxu0 0.0
    %255 = vmatpush1.msra.mxu0 0.0
    %256 = vmatprep.subr.mxu0 0.0
    %257 = vmatpush1.msra.mxu0 0.0
    %258 = vmatprep.subr.mxu0 0.0
    %259 = vmatpush1.msra.mxu0 0.0
    %260 = vmatprep.subr.mxu0 0.0
    %261 = vmatpush1.msra.mxu0 0.0
    %262 = vmatprep.subr.mxu0 0.0
    %263 = vmatpush1.msra.mxu0 0.0
    %264 = vmatprep.subr.mxu0 0.0
    %265 = vmatpush1.msra.mxu0 0.0
    %266 = vmatprep.mubr.f32.mxu0 0.0
    %267 = vmatmul.mubr.f32.gmra.mrb[0].mxu0 %v191
    %v268 = vpop.f32.mrb[0].mxu0
    %v269 = vadd.f32 %v172, %v268
    %v270 = vpop.f32.mrb[0].mxu0
    %271 = vmatprep.mubr.f32.mxu0 0.0
    %272 = vmatmul.mubr.f32.gmra.mrb[0].mxu0 %v194
    %v273 = vpop.f32.mrb[0].mxu0
    %v274 = vadd.f32 %v177, %v273
    %v275 = vpop.f32.mrb[0].mxu0
    %276 = vmatprep.mubr.f32.mxu0 0.0
    %277 = vmatmul.mubr.f32.gmra.mrb[0].mxu0 %v197
    %v278 = vpop.f32.mrb[0].mxu0
    %v279 = vadd.f32 %v182, %v278
    %v280 = vpop.f32.mrb[0].mxu0
    %281 = vmatprep.mubr.f32.mxu0 0.0
    %282 = vmatmul.mubr.f32.gmra.mrb[0].mxu0 %v200
    %v283 = vpop.f32.mrb[0].mxu0
    %v284 = vadd.f32 %v187, %v283
    %v285 = vpop.f32.mrb[0].mxu0
    %286 = vdwg.mxu0
    %v287 = vtanh.pop %v269
    %v288 = vtanh.pop %v274
    %v289 = vtanh.pop %v279
    %v290 = vtanh.pop %v284
    %v291 = vld [vmem:[%s5] sm:$0x1]
    %v292 = vld [vmem:[#allocation2] sm:$0x1]
    %294 = vset.pattern.permute.xlu0 0
    %295 = vperm.xlu0 %294, %v292
    %v296 = vpop.permute.xlu0 %295
    %v298 = vlaneseq
    %v299 = vshrl.u32 %v298, 7
    %v300 = vsub.s32 0, %v299
    %v301 = vrot.slane %v296, %v300
    %v303 = vsel %vm189, %v291, 0
    %305 = vmatprep.subr.mxu0 0.0
    %306 = vmatpush1.msra.mxu0 %v287
    %307 = vmatprep.subr.mxu0 0.0
    %308 = vmatpush1.msra.mxu0 %v288
    %309 = vmatprep.subr.mxu0 0.0
    %310 = vmatpush1.msra.mxu0 %v289
    %311 = vmatprep.subr.mxu0 0.0
    %312 = vmatpush1.msra.mxu0 %v290
    %313 = vmatprep.subr.mxu0 0.0
    %314 = vmatpush1.msra.mxu0 0.0
    %315 = vmatprep.subr.mxu0 0.0
    %316 = vmatpush1.msra.mxu0 0.0
    %317 = vmatprep.subr.mxu0 0.0
    %318 = vmatpush1.msra.mxu0 0.0
    %319 = vmatprep.subr.mxu0 0.0
    %320 = vmatpush1.msra.mxu0 0.0
    %321 = vmatprep.subr.mxu0 0.0
    %322 = vmatpush1.msra.mxu0 0.0
    %323 = vmatprep.subr.mxu0 0.0
    %324 = vmatpush1.msra.mxu0 0.0
    %325 = vmatprep.subr.mxu0 0.0
    %326 = vmatpush1.msra.mxu0 0.0
    %327 = vmatprep.subr.mxu0 0.0
    %328 = vmatpush1.msra.mxu0 0.0
    %329 = vmatprep.subr.mxu0 0.0
    %330 = vmatpush1.msra.mxu0 0.0
    %331 = vmatprep.subr.mxu0 0.0
    %332 = vmatpush1.msra.mxu0 0.0
    %333 = vmatprep.subr.mxu0 0.0
    %334 = vmatpush1.msra.mxu0 0.0
    %335 = vmatprep.subr.mxu0 0.0
    %336 = vmatpush1.msra.mxu0 0.0
    %337 = vmatprep.subr.mxu0 0.0
    %338 = vmatpush1.msra.mxu0 0.0
    %339 = vmatprep.subr.mxu0 0.0
    %340 = vmatpush1.msra.mxu0 0.0
    %341 = vmatprep.subr.mxu0 0.0
    %342 = vmatpush1.msra.mxu0 0.0
    %343 = vmatprep.subr.mxu0 0.0
    %344 = vmatpush1.msra.mxu0 0.0
    %345 = vmatprep.subr.mxu0 0.0
    %346 = vmatpush1.msra.mxu0 0.0
    %347 = vmatprep.subr.mxu0 0.0
    %348 = vmatpush1.msra.mxu0 0.0
    %349 = vmatprep.subr.mxu0 0.0
    %350 = vmatpush1.msra.mxu0 0.0
    %351 = vmatprep.subr.mxu0 0.0
    %352 = vmatpush1.msra.mxu0 0.0
    %353 = vmatprep.subr.mxu0 0.0
    %354 = vmatpush1.msra.mxu0 0.0
    %355 = vmatprep.subr.mxu0 0.0
    %356 = vmatpush1.msra.mxu0 0.0
    %357 = vmatprep.subr.mxu0 0.0
    %358 = vmatpush1.msra.mxu0 0.0
    %359 = vmatprep.subr.mxu0 0.0
    %360 = vmatpush1.msra.mxu0 0.0
    %361 = vmatprep.subr.mxu0 0.0
    %362 = vmatpush1.msra.mxu0 0.0
    %363 = vmatprep.subr.mxu0 0.0
    %364 = vmatpush1.msra.mxu0 0.0
    %365 = vmatprep.subr.mxu0 0.0
    %366 = vmatpush1.msra.mxu0 0.0
    %367 = vmatprep.subr.mxu0 0.0
    %368 = vmatpush1.msra.mxu0 0.0
    %369 = vmatprep.mubr.f32.mxu0 0.0
    %370 = vmatmul.mubr.f32.gmra.mrb[0].mxu0 %v303
    %v371 = vpop.f32.mrb[0].mxu0
    %v372 = vadd.f32 %v301, %v371
    %v373 = vpop.f32.mrb[0].mxu0
    %374 = vdwg.mxu0
    %vm375 = vcmask 57344
    %376 = vst.msk [vmem:[#allocation3] sm:$0x1] %vm375, %v372
    // Predicated region
    $region30: #{tpu_custom_call.1} parent=1 // pred_check
      _
    $region31: #{tpu_custom_call.1} parent=1 // pred_check_branch
      %378 = sbr.rel (0) target = $region33
    $region32: #{tpu_custom_call.1} parent=1 // pred_region
      %s380 = ssub.s32 16, 16
      %381 = vsyncadd [#allocation4], %s380
      %s383 = sshll.u32 [#allocation3], 4
      %s384 = int_to_ptr.vmem [resolvable:$true] %s383
      %386 = dma.vmem_to_hbm [thread:$0]  %s384, 16, %s7, [#allocation4]
    $region33: #{tpu_custom_call.1} parent=1 // pred_fallthru
      _
    // Predicated region
    $region34: #{tpu_custom_call.1} parent=1 // pred_check
      _
    $region35: #{tpu_custom_call.1} parent=1 // pred_check_branch
      %388 = sbr.rel (0) target = $region37
    $region36: #{tpu_custom_call.1} parent=1 // pred_region
      %389 = dma.done [#allocation4], 16
    $region37: #{tpu_custom_call.1} parent=1 // pred_fallthru
      _
    %390 = vsyncpa [#allocation4], 1

</llo_original>
